<compile_context>
chip_gen: v6e
topology: v6e:2x2x1
jax: 0.10.0
libtpu: 0.0.40
codegen_flags: <defaults>
</compile_context>

<pallas_src>
import functools

import jax
import jax.numpy as jnp
from jax.experimental import pallas as pl
from jax.experimental.pallas import tpu as pltpu


def _round_up(x, m):
    return ((x + m - 1) // m) * m


# ------------------------------ fused kernel --------------------------------


def _fused_backbone_head_kernel(
    patches_ref,   # (bt, ts, Kp)  bf16 im2col rows: bt images x one spatial tile
    wconv_ref,     # (Kp, F)       flattened 3x3 conv weight (zero-padded K)
    cscale_ref,    # (1, F)        folded BatchNorm2d scale
    cshift_ref,    # (1, F)        folded BatchNorm2d shift
    w1_ref,        # (F, Hd)       head Linear 1
    b1_ref,        # (1, Hd)
    s1_ref,        # (1, Hd)       folded BatchNorm1d scale
    t1_ref,        # (1, Hd)       folded BatchNorm1d shift
    w2_ref,        # (Hd, Cp)      head Linear 2 (lane-padded to Cp=128)
    b2_ref,        # (1, Cp)
    o_ref,         # (1, bt, Cp)   logits output block (lane-dense)
    acc_ref,       # (bt, F)       f32 scratch: per-image running spatial sums
    *, hw, ts, bt, pad_rows, single_step,
):
    kp = patches_ref.shape[-1]
    f = wconv_ref.shape[-1]

    # Conv as im2col GEMM with batch folded into M (bt*ts rows): bf16 operands,
    # f32 accumulate; folded BN2d + ReLU epilogue stays in f32.
    p = patches_ref[...].reshape(bt * ts, kp)
    y = jnp.dot(p, wconv_ref[...], preferred_element_type=jnp.float32)
    y = y * cscale_ref[...] + cshift_ref[...]
    y = jnp.maximum(y, 0.0)
    part = jnp.sum(y.reshape(bt, ts, f), axis=1)               # (bt, F)

    def _finalize(sums):
        # Zero-padded patch rows each contribute exactly relu(cshift); subtract
        # that closed-form correction once (no per-step masking anywhere).
        if pad_rows:
            sums = sums - pad_rows * jnp.maximum(cshift_ref[...], 0.0)
        feat = sums * (1.0 / hw)                               # (bt, F) GAP
        # Head: Linear -> BatchNorm1d (folded) -> ReLU -> Dropout(id) -> Linear.
        h = jnp.dot(feat, w1_ref[...], preferred_element_type=jnp.float32)
        h = h + b1_ref[...]
        h = jnp.maximum(h * s1_ref[...] + t1_ref[...], 0.0)
        # TODO(synk): training-mode Dropout(0.5) / batch-stat BatchNorm not modeled.
        logits = jnp.dot(h, w2_ref[...], preferred_element_type=jnp.float32)
        logits = logits + b2_ref[...]                          # (bt, Cp)
        o_ref[...] = logits.reshape(o_ref.shape)

    if single_step:
        # hw fits in one spatial tile: no cross-step accumulator needed.
        _finalize(part)
    else:
        s = pl.program_id(1)

        @pl.when(s == 0)
        def _():
            acc_ref[...] = jnp.zeros_like(acc_ref)

        acc_ref[...] += part

        @pl.when(s == pl.num_programs(1) - 1)
        def _():
            _finalize(acc_ref[...])


# ------------------------------ host wrappers --------------------------------


def _im2col_3x3(x_nhwc):
    """3x3 (pad=1, stride=1) patches: (N,H,W,C) -> (N, H*W, 9*C), order (kh,kw,c)."""
    n, h, w, c = x_nhwc.shape
    xp = jnp.pad(x_nhwc, ((0, 0), (1, 1), (1, 1), (0, 0)))
    cols = []
    for kh in range(3):
        for kw in range(3):
            cols.append(xp[:, kh : kh + h, kw : kw + w, :])
    patches = jnp.stack(cols, axis=3)                # (N, H, W, 9, C)
    return patches.reshape(n, h * w, 9 * c)


def timm_forward(x_nchw, params, *, spatial_tile=4096, batch_tile=8,
                 conv_dtype=jnp.bfloat16):
    """Full TIMM.forward: backbone features -> head logits.

    x_nchw: (N, C, H, W) float32, exactly like the PyTorch module's input.
    returns logits of shape (N, n_classes).
    """
    n, c, h, w = x_nchw.shape
    f = params["conv_w"].shape[-1]
    hd = params["w1"].shape[1]
    ncls = params["w2"].shape[1]

    hw = h * w
    k = 9 * c
    kp = _round_up(k, 8)     # 27 -> 32; do NOT pad K further (DMA-bound, not MXU)
    cp = 128                 # lane-dense logits slab
    dsize = jnp.dtype(conv_dtype).itemsize

    # Batch tile: fold images into the GEMM M dim, but keep >= 2 blocks on the
    # parallel axis whenever N >= 2 so both v7x TensorCores get work.
    bt = max(1, min(batch_tile, -(-n // 2)))
    n_btiles = -(-n // bt)
    n_pad = n_btiles * bt

    # Spatial tile: as large as possible, 16-aligned (bf16 sublane pairs),
    # capped so the double-buffered patch block stays <= ~8 MiB (v5e-safe).
    ts = min(_round_up(spatial_tile, 16), _round_up(hw, 16))
    ts_cap = max(16, ((8 * 1024 * 1024) // (2 * bt * kp * dsize)) // 16 * 16)
    ts = min(ts, ts_cap)
    hw_pad = _round_up(hw, ts)
    s_tiles = hw_pad // ts
    pad_rows = hw_pad - hw

    # Host preprocessing in bf16 (cast before transpose / im2col to halve the
    # pad/stack/reshape HBM traffic).
    x = jnp.transpose(x_nchw.astype(conv_dtype), (0, 2, 3, 1))       # NHWC bf16
    patches = _im2col_3x3(x)                                         # (N, HW, K)
    patches = jnp.pad(
        patches, ((0, n_pad - n), (0, hw_pad - hw), (0, kp - k)))    # zeros

    wconv = params["conv_w"].reshape(k, f)
    wconv = jnp.zeros((kp, f), jnp.float32).at[:k, :].set(wconv).astype(conv_dtype)

    w2p = jnp.zeros((hd, cp), jnp.float32).at[:, :ncls].set(params["w2"])
    b2p = jnp.zeros((1, cp), jnp.float32).at[:, :ncls].set(params["b2"])

    kernel = functools.partial(
        _fused_backbone_head_kernel,
        hw=hw, ts=ts, bt=bt, pad_rows=pad_rows, single_step=(s_tiles == 1),
    )

    out = pl.pallas_call(
        kernel,
        out_shape=jax.ShapeDtypeStruct((n_btiles, bt, cp), jnp.float32),
        grid=(n_btiles, s_tiles),
        in_specs=[
            pl.BlockSpec((bt, ts, kp), lambda i, s: (i, s, 0)),   # patches
            pl.BlockSpec((kp, f), lambda i, s: (0, 0)),           # conv weight
            pl.BlockSpec((1, f), lambda i, s: (0, 0)),            # bn2d scale
            pl.BlockSpec((1, f), lambda i, s: (0, 0)),            # bn2d shift
            pl.BlockSpec((f, hd), lambda i, s: (0, 0)),           # head w1
            pl.BlockSpec((1, hd), lambda i, s: (0, 0)),           # head b1
            pl.BlockSpec((1, hd), lambda i, s: (0, 0)),           # bn1d scale
            pl.BlockSpec((1, hd), lambda i, s: (0, 0)),           # bn1d shift
            pl.BlockSpec((hd, cp), lambda i, s: (0, 0)),          # head w2 (padded)
            pl.BlockSpec((1, cp), lambda i, s: (0, 0)),           # head b2 (padded)
        ],
        out_specs=pl.BlockSpec((1, bt, cp), lambda i, s: (i, 0, 0)),
        scratch_shapes=[pltpu.VMEM((bt, f), jnp.float32)],
        compiler_params=pltpu.CompilerParams(
            dimension_semantics=("parallel", "arbitrary"),
            vmem_limit_bytes=32 * 1024 * 1024,
        ),
    )(
        patches,
        wconv,
        params["conv_bn_scale"].reshape(1, f),
        params["conv_bn_shift"].reshape(1, f),
        params["w1"],
        params["b1"],
        params["bn_scale"],
        params["bn_shift"],
        w2p,
        b2p,
    )
    return out.reshape(n_pad, cp)[:n, :ncls]                          # (N, n_classes)


def timm_reference(x_nchw, params):
    """Pure-JAX f32 reference of the same forward pass (for correctness check)."""
    x = jnp.transpose(x_nchw, (0, 2, 3, 1))
    y = jax.lax.conv_general_dilated(
        x, params["conv_w"], window_strides=(1, 1), padding="SAME",
        dimension_numbers=("NHWC", "HWIO", "NHWC"))
    y = y * params["conv_bn_scale"] + params["conv_bn_shift"]
    y = jnp.maximum(y, 0.0)
    feat = jnp.mean(y, axis=(1, 2))                                   # (N, F)
    h1 = feat @ params["w1"] + params["b1"]
    h1 = jnp.maximum(h1 * params["bn_scale"] + params["bn_shift"], 0.0)
    return h1 @ params["w2"] + params["b2"]


# -------------------------- deterministic params ----------------------------


def make_params(key, in_channels=3, num_features=32, dims_head=(None, 16, 1)):
    dims = list(dims_head)
    if dims[0] is None:
        dims[0] = num_features
    n_classes = dims[-1]
    hidden = dims[1]
    ks = jax.random.split(key, 12)
    eps = 1e-5

    # backbone conv (HWIO layout) + folded BatchNorm2d running stats
    conv_w = 0.1 * jax.random.normal(ks[0], (3, 3, in_channels, num_features), jnp.float32)
    gamma = 1.0 + 0.1 * jax.random.normal(ks[1], (num_features,), jnp.float32)
    beta = 0.1 * jax.random.normal(ks[2], (num_features,), jnp.float32)
    rmean = 0.05 * jax.random.normal(ks[3], (num_features,), jnp.float32)
    rvar = jnp.abs(1.0 + 0.1 * jax.random.normal(ks[4], (num_features,), jnp.float32))
    conv_bn_scale = gamma / jnp.sqrt(rvar + eps)
    conv_bn_shift = beta - rmean * conv_bn_scale

    # head: Linear(num_features, hidden) + BatchNorm1d(hidden) + ReLU + Dropout
    w1 = 0.1 * jax.random.normal(ks[5], (num_features, hidden), jnp.float32)
    b1 = 0.1 * jax.random.normal(ks[6], (hidden,), jnp.float32)
    g1 = 1.0 + 0.1 * jax.random.normal(ks[7], (hidden,), jnp.float32)
    be1 = 0.1 * jax.random.normal(ks[8], (hidden,), jnp.float32)
    rm1 = 0.05 * jax.random.normal(ks[9], (hidden,), jnp.float32)
    rv1 = jnp.abs(1.0 + 0.1 * jax.random.normal(ks[10], (hidden,), jnp.float32))
    bn_scale = g1 / jnp.sqrt(rv1 + eps)
    bn_shift = be1 - rm1 * bn_scale

    # final Linear(hidden, n_classes)
    w2 = 0.1 * jax.random.normal(ks[11], (hidden, n_classes), jnp.float32)
    b2 = jnp.zeros((n_classes,), jnp.float32)

    return {
        "conv_w": conv_w,
        "conv_bn_scale": conv_bn_scale,
        "conv_bn_shift": conv_bn_shift,
        "w1": w1,
        "b1": b1.reshape(1, hidden),
        "bn_scale": bn_scale.reshape(1, hidden),
        "bn_shift": bn_shift.reshape(1, hidden),
        "w2": w2,
        "b2": b2.reshape(1, n_classes),
    }


if __name__ == "__main__":
    key = jax.random.PRNGKey(0)
    k_x, k_p, k_x2 = jax.random.split(key, 3)

    batch, in_channels, spatial = 2, 3, 16
    x = jax.random.normal(k_x, (batch, in_channels, spatial, spatial), jnp.float32)
    params = make_params(k_p, in_channels=in_channels, num_features=32,
                         dims_head=(None, 16, 1))

    fwd = jax.jit(functools.partial(timm_forward, params=params))
    logits = fwd(x)
    jax.block_until_ready(logits)
    assert logits.shape == (batch, 1)

    ref = timm_reference(x, params)
    err = float(jnp.max(jnp.abs(logits - ref)))
    assert err < 2e-2, f"mismatch vs reference: {err}"

    # Second case exercising padded spatial rows (hw=100 -> ts=112) and a
    # padded batch (N=3 -> bt=2, n_pad=4).
    x2 = jax.random.normal(k_x2, (3, in_channels, 10, 10), jnp.float32)
    logits2 = jax.jit(functools.partial(timm_forward, params=params))(x2)
    jax.block_until_ready(logits2)
    assert logits2.shape == (3, 1)
    err2 = float(jnp.max(jnp.abs(logits2 - timm_reference(x2, params))))
    assert err2 < 2e-2, f"mismatch vs reference (padded case): {err2}"

    print("KERNEL_OK")
</pallas_src>

<mosaic_0001>
module attributes {stable_mosaic.version = 11 : i64} {
  func.func @_fused_backbone_head_kernel(%arg0: i32, %arg1: i32, %arg2: memref<1x256x32xbf16, #tpu.memory_space<vmem>>, %arg3: memref<32x32xbf16, #tpu.memory_space<vmem>>, %arg4: memref<1x32xf32, #tpu.memory_space<vmem>>, %arg5: memref<1x32xf32, #tpu.memory_space<vmem>>, %arg6: memref<32x16xf32, #tpu.memory_space<vmem>>, %arg7: memref<1x16xf32, #tpu.memory_space<vmem>>, %arg8: memref<1x16xf32, #tpu.memory_space<vmem>>, %arg9: memref<1x16xf32, #tpu.memory_space<vmem>>, %arg10: memref<16x128xf32, #tpu.memory_space<vmem>>, %arg11: memref<1x128xf32, #tpu.memory_space<vmem>>, %arg12: memref<1x1x128xf32, #tpu.memory_space<vmem>>, %arg13: memref<1x32xf32, #tpu.memory_space<vmem>>) attributes {dimension_semantics = [#tpu.dimension_semantics<parallel>, #tpu.dimension_semantics<arbitrary>], iteration_bounds = array<i64: 2, 1>, scalar_prefetch = 0 : i64, scratch_operands = 1 : i64, tpu.core_type = #tpu.core_type<tc>, window_params = [{transform_indices = @transform_0, window_bounds = array<i64: 1, 256, 32>}, {pipeline_mode = #tpu.pipeline_mode<synchronous>, transform_indices = @transform_1, window_bounds = array<i64: 32, 32>}, {pipeline_mode = #tpu.pipeline_mode<synchronous>, transform_indices = @transform_2, window_bounds = array<i64: 1, 32>}, {pipeline_mode = #tpu.pipeline_mode<synchronous>, transform_indices = @transform_3, window_bounds = array<i64: 1, 32>}, {pipeline_mode = #tpu.pipeline_mode<synchronous>, transform_indices = @transform_4, window_bounds = array<i64: 32, 16>}, {pipeline_mode = #tpu.pipeline_mode<synchronous>, transform_indices = @transform_5, window_bounds = array<i64: 1, 16>}, {pipeline_mode = #tpu.pipeline_mode<synchronous>, transform_indices = @transform_6, window_bounds = array<i64: 1, 16>}, {pipeline_mode = #tpu.pipeline_mode<synchronous>, transform_indices = @transform_7, window_bounds = array<i64: 1, 16>}, {pipeline_mode = #tpu.pipeline_mode<synchronous>, transform_indices = @transform_8, window_bounds = array<i64: 16, 128>}, {pipeline_mode = #tpu.pipeline_mode<synchronous>, transform_indices = @transform_9, window_bounds = array<i64: 1, 128>}, {transform_indices = @transform_10, window_bounds = array<i64: 1, 1, 128>}]} {
    %c0 = arith.constant 0 : index
    %c0_0 = arith.constant 0 : index
    %c0_1 = arith.constant 0 : index
    %0 = vector.load %arg2[%c0, %c0_0, %c0_1] : memref<1x256x32xbf16, #tpu.memory_space<vmem>>, vector<1x256x32xbf16>
    %1 = vector.shape_cast %0 : vector<1x256x32xbf16> to vector<256x32xbf16>
    %c0_2 = arith.constant 0 : index
    %c0_3 = arith.constant 0 : index
    %2 = vector.load %arg3[%c0_2, %c0_3] : memref<32x32xbf16, #tpu.memory_space<vmem>>, vector<32x32xbf16>
    %cst = arith.constant dense<0.000000e+00> : vector<256x32xf32>
    %3 = tpu.matmul %1, %2, %cst {dimension_numbers = #tpu.dot_dimension_numbers<[1], [0], [0], [1], [0, 0, 1, 1], [], []>} : vector<256x32xbf16>, vector<32x32xbf16>, vector<256x32xf32> -> vector<256x32xf32>
    %c0_4 = arith.constant 0 : index
    %c0_5 = arith.constant 0 : index
    %4 = vector.load %arg4[%c0_4, %c0_5] : memref<1x32xf32, #tpu.memory_space<vmem>>, vector<1x32xf32>
    %5 = vector.broadcast %4 : vector<1x32xf32> to vector<256x32xf32>
    %6 = arith.mulf %3, %5 : vector<256x32xf32>
    %c0_6 = arith.constant 0 : index
    %c0_7 = arith.constant 0 : index
    %7 = vector.load %arg5[%c0_6, %c0_7] : memref<1x32xf32, #tpu.memory_space<vmem>>, vector<1x32xf32>
    %8 = vector.broadcast %7 : vector<1x32xf32> to vector<256x32xf32>
    %9 = arith.addf %6, %8 : vector<256x32xf32>
    %cst_8 = arith.constant 0.000000e+00 : f32
    %10 = vector.broadcast %cst_8 : f32 to vector<256x32xf32>
    %11 = arith.maximumf %9, %10 : vector<256x32xf32>
    %12 = vector.shape_cast %11 : vector<256x32xf32> to vector<1x256x32xf32>
    %cst_9 = arith.constant dense<0.000000e+00> : vector<1x32xf32>
    %13 = vector.multi_reduction <add>, %12, %cst_9 [1] : vector<1x256x32xf32> to vector<1x32xf32>
    %cst_10 = arith.constant 3.906250e-03 : f32
    %14 = vector.broadcast %cst_10 : f32 to vector<1x32xf32>
    %15 = arith.mulf %13, %14 : vector<1x32xf32>
    %c0_11 = arith.constant 0 : index
    %c0_12 = arith.constant 0 : index
    %16 = vector.load %arg6[%c0_11, %c0_12] : memref<32x16xf32, #tpu.memory_space<vmem>>, vector<32x16xf32>
    %cst_13 = arith.constant dense<0.000000e+00> : vector<1x16xf32>
    %17 = tpu.matmul %15, %16, %cst_13 {dimension_numbers = #tpu.dot_dimension_numbers<[1], [0], [0], [1], [0, 0, 1, 1], [], []>} : vector<1x32xf32>, vector<32x16xf32>, vector<1x16xf32> -> vector<1x16xf32>
    %c0_14 = arith.constant 0 : index
    %c0_15 = arith.constant 0 : index
    %18 = vector.load %arg7[%c0_14, %c0_15] : memref<1x16xf32, #tpu.memory_space<vmem>>, vector<1x16xf32>
    %19 = arith.addf %17, %18 : vector<1x16xf32>
    %c0_16 = arith.constant 0 : index
    %c0_17 = arith.constant 0 : index
    %20 = vector.load %arg8[%c0_16, %c0_17] : memref<1x16xf32, #tpu.memory_space<vmem>>, vector<1x16xf32>
    %21 = arith.mulf %19, %20 : vector<1x16xf32>
    %c0_18 = arith.constant 0 : index
    %c0_19 = arith.constant 0 : index
    %22 = vector.load %arg9[%c0_18, %c0_19] : memref<1x16xf32, #tpu.memory_space<vmem>>, vector<1x16xf32>
    %23 = arith.addf %21, %22 : vector<1x16xf32>
    %cst_20 = arith.constant 0.000000e+00 : f32
    %24 = vector.broadcast %cst_20 : f32 to vector<1x16xf32>
    %25 = arith.maximumf %23, %24 : vector<1x16xf32>
    %c0_21 = arith.constant 0 : index
    %c0_22 = arith.constant 0 : index
    %26 = vector.load %arg10[%c0_21, %c0_22] : memref<16x128xf32, #tpu.memory_space<vmem>>, vector<16x128xf32>
    %cst_23 = arith.constant dense<0.000000e+00> : vector<1x128xf32>
    %27 = tpu.matmul %25, %26, %cst_23 {dimension_numbers = #tpu.dot_dimension_numbers<[1], [0], [0], [1], [0, 0, 1, 1], [], []>} : vector<1x16xf32>, vector<16x128xf32>, vector<1x128xf32> -> vector<1x128xf32>
    %c0_24 = arith.constant 0 : index
    %c0_25 = arith.constant 0 : index
    %28 = vector.load %arg11[%c0_24, %c0_25] : memref<1x128xf32, #tpu.memory_space<vmem>>, vector<1x128xf32>
    %29 = arith.addf %27, %28 : vector<1x128xf32>
    %30 = vector.shape_cast %29 : vector<1x128xf32> to vector<1x1x128xf32>
    %c0_26 = arith.constant 0 : index
    %c0_27 = arith.constant 0 : index
    %c0_28 = arith.constant 0 : index
    %31 = vector.load %arg12[%c0_26, %c0_27, %c0_28] : memref<1x1x128xf32, #tpu.memory_space<vmem>>, vector<1x1x128xf32>
    tpu.vector_store %arg12[%c0_26, %c0_27, %c0_28], %30 {strides = array<i32>} : memref<1x1x128xf32, #tpu.memory_space<vmem>>, vector<1x1x128xf32>,
    return
  }
  func.func @transform_0(%arg0: i32, %arg1: i32) -> (i32, i32, i32) {
    %c0_i32 = arith.constant 0 : i32
    %c0_i32_0 = arith.constant 0 : i32
    return %arg0, %arg1, %c0_i32 : i32, i32, i32
  }
  func.func @transform_1(%arg0: i32, %arg1: i32) -> (i32, i32) {
    %c0_i32 = arith.constant 0 : i32
    %c0_i32_0 = arith.constant 0 : i32
    %c0_i32_1 = arith.constant 0 : i32
    return %c0_i32, %c0_i32_0 : i32, i32
  }
  func.func @transform_2(%arg0: i32, %arg1: i32) -> (i32, i32) {
    %c0_i32 = arith.constant 0 : i32
    %c0_i32_0 = arith.constant 0 : i32
    %c0_i32_1 = arith.constant 0 : i32
    return %c0_i32, %c0_i32_0 : i32, i32
  }
  func.func @transform_3(%arg0: i32, %arg1: i32) -> (i32, i32) {
    %c0_i32 = arith.constant 0 : i32
    %c0_i32_0 = arith.constant 0 : i32
    %c0_i32_1 = arith.constant 0 : i32
    return %c0_i32, %c0_i32_0 : i32, i32
  }
  func.func @transform_4(%arg0: i32, %arg1: i32) -> (i32, i32) {
    %c0_i32 = arith.constant 0 : i32
    %c0_i32_0 = arith.constant 0 : i32
    %c0_i32_1 = arith.constant 0 : i32
    return %c0_i32, %c0_i32_0 : i32, i32
  }
  func.func @transform_5(%arg0: i32, %arg1: i32) -> (i32, i32) {
    %c0_i32 = arith.constant 0 : i32
    %c0_i32_0 = arith.constant 0 : i32
    %c0_i32_1 = arith.constant 0 : i32
    return %c0_i32, %c0_i32_0 : i32, i32
  }
  func.func @transform_6(%arg0: i32, %arg1: i32) -> (i32, i32) {
    %c0_i32 = arith.constant 0 : i32
    %c0_i32_0 = arith.constant 0 : i32
    %c0_i32_1 = arith.constant 0 : i32
    return %c0_i32, %c0_i32_0 : i32, i32
  }
  func.func @transform_7(%arg0: i32, %arg1: i32) -> (i32, i32) {
    %c0_i32 = arith.constant 0 : i32
    %c0_i32_0 = arith.constant 0 : i32
    %c0_i32_1 = arith.constant 0 : i32
    return %c0_i32, %c0_i32_0 : i32, i32
  }
  func.func @transform_8(%arg0: i32, %arg1: i32) -> (i32, i32) {
    %c0_i32 = arith.constant 0 : i32
    %c0_i32_0 = arith.constant 0 : i32
    %c0_i32_1 = arith.constant 0 : i32
    return %c0_i32, %c0_i32_0 : i32, i32
  }
  func.func @transform_9(%arg0: i32, %arg1: i32) -> (i32, i32) {
    %c0_i32 = arith.constant 0 : i32
    %c0_i32_0 = arith.constant 0 : i32
    %c0_i32_1 = arith.constant 0 : i32
    return %c0_i32, %c0_i32_0 : i32, i32
  }
  func.func @transform_10(%arg0: i32, %arg1: i32) -> (i32, i32, i32) {
    %c0_i32 = arith.constant 0 : i32
    %c0_i32_0 = arith.constant 0 : i32
    %c0_i32_1 = arith.constant 0 : i32
    return %arg0, %c0_i32, %c0_i32_0 : i32, i32, i32
  }
}

</mosaic_0001>

<llo_original>
// kernel: timm_forward.1
$region0: #{timm_forward.1}
  #allocation0 [shape = 'u32[]', space=smem, size = 0x4, offset = 0x4, fixed_abs, tag = 'smem constant byte address 0x4 - core index']
  #allocation1 [shape = 'u32[144,128]{1,0:T(1,128)}', space=vmem, size = 0x12000, scoped, tag = 'internal scratch']
  #allocation2 [shape = 'f32[1,32]{1,0:T(1,128)}', space=vmem, size = 0x200, scoped, tag = 'scratch operand']
  %s0 = inlined_call_operand.vmem [shape: bf16[2,256,32], index: 0, kind: input, shape index: {}]
  %s1 = inlined_call_operand.vmem [shape: bf16[32,32], index: 1, kind: input, shape index: {}]
  %s2 = inlined_call_operand.vmem [shape: f32[1,32], index: 2, kind: input, shape index: {}]
  %s3 = inlined_call_operand.vmem [shape: f32[1,32], index: 3, kind: input, shape index: {}]
  %s4 = inlined_call_operand.vmem [shape: f32[32,16], index: 4, kind: input, shape index: {}]
  %s5 = inlined_call_operand.vmem [shape: f32[1,16], index: 5, kind: input, shape index: {}]
  %s6 = inlined_call_operand.vmem [shape: f32[1,16], index: 6, kind: input, shape index: {}]
  %s7 = inlined_call_operand.vmem [shape: f32[1,16], index: 7, kind: input, shape index: {}]
  %s8 = inlined_call_operand.vmem [shape: f32[16,128], index: 8, kind: input, shape index: {}]
  %s9 = inlined_call_operand.vmem [shape: f32[1,128], index: 9, kind: input, shape index: {}]
  %s10 = inlined_call_operand.vmem [shape: f32[2,1,128], index: 10, kind: output, shape index: {}]
  %s11 = sld [smem:[#allocation0]]
  $region73: #{timm_forward.1} parent=0
    _
  %s13 = ssub.s32 1, %s11
  %s14 = scalar_select 0, %s13, %s11
  loop: start=0, step=1, limit=4
  $region2: #{timm_forward.1} parent=0 // loop_pre_header
    _
  $region3: #{timm_forward.1} parent=0 // loop_header
    %s16 = sphi 0, %s20
    %p17 = scmp.ge.s32.totalorder %s16, 4
    %s23 = sphi 0, %s35
    %s24 = sphi 0, %s31
    %s25 = sphi 0, %s23
    %s26 = sphi 0, %s24
    %s27 = sphi 0, %s25
    %s28 = sphi 0, %s26
    %s40 = sphi 0, %s42
    %s43 = sphi 0, %s40
    %s44 = sphi 0, %s43
    %s60 = sphi 0, %s44
    %s64 = sphi 0, %s64
    %s66 = sphi 0, %s64
    %s67 = sphi 0, %s66
    %s81 = sphi 0, %s67
    %s85 = sphi 0, %s85
    %s87 = sphi 0, %s85
    %s88 = sphi 0, %s87
    %s102 = sphi 0, %s88
    %s106 = sphi 0, %s106
    %s108 = sphi 0, %s106
    %s109 = sphi 0, %s108
    %s123 = sphi 0, %s109
    %s127 = sphi 0, %s127
    %s129 = sphi 0, %s127
    %s130 = sphi 0, %s129
    %s144 = sphi 0, %s130
    %s148 = sphi 0, %s148
    %s150 = sphi 0, %s148
    %s151 = sphi 0, %s150
    %s165 = sphi 0, %s151
    %s169 = sphi 0, %s169
    %s171 = sphi 0, %s169
    %s172 = sphi 0, %s171
    %s186 = sphi 0, %s172
    %s190 = sphi 0, %s190
    %s192 = sphi 0, %s190
    %s193 = sphi 0, %s192
    %s207 = sphi 0, %s193
    %s211 = sphi 0, %s211
    %s213 = sphi 0, %s211
    %s214 = sphi 0, %s213
    %s228 = sphi 0, %s214
    %s232 = sphi 0, %s232
    %s234 = sphi 0, %s232
    %s235 = sphi 0, %s234
    %s249 = sphi 0, %s235
    %s255 = sphi 0, %s257
    %s258 = sphi 0, %s255
    %s259 = sphi 0, %s258
    %s275 = sphi 0, %s259
  $region4: #{timm_forward.1} parent=0 // loop_header_branch
    %19 = sbr.rel (%p17) target = $region8
  $region5: #{timm_forward.1} parent=0 // loop_body
    %s21 = ssub.s32 %s16, 1
    %s22 = ssub.s32 %s16, 2
    %s29 = sadd.s32 1, %s24
    %p30 = scmp.ge.s32.totalorder %s29, 1
    %s31 = scalar_select %p30, 0, %s29
    %s32 = sadd.s32 1, %s23
    %s33 = scalar_select %p30, %s32, %s23
    %p34 = scmp.ge.s32.totalorder %s33, 2
    %s35 = scalar_select %p34, 0, %s33
    %s36 = ssub.s32 %s23, %s35
    %s37 = ssub.s32 %s24, %s31
    %s38 = sor.u32 %s36, %s37
    %p39 = scmp.eq.s32.totalorder %s38, 0
    %s41 = sadd.s32 %s40, 1
    %s42 = scalar_select %p39, %s40, %s41
    %p45 = pneg %p39
    %p46 = scmp.eq.s32.totalorder %s16, 1
    %p47 = por %p45, %p46
    %p48 = scmp.ne.s32.totalorder %s40, %s43
    %p49 = scmp.eq.s32.totalorder %s16, 0
    %p50 = por %p48, %p49
    %p51 = scmp.ne.s32.totalorder %s40, %s43
    %p52 = scmp.eq.s32.totalorder %s21, 1
    %p53 = por %p51, %p52
    %p54 = scmp.ne.s32.totalorder %s43, %s44
    %p55 = scmp.eq.s32.totalorder %s21, 0
    %p56 = por %p54, %p55
    %p57 = scmp.ne.s32.totalorder %s43, %s44
    %p58 = scmp.eq.s32.totalorder %s22, 1
    %p59 = por %p57, %p58
    %p61 = scmp.ne.s32.totalorder %s44, %s60
    %p62 = scmp.eq.s32.totalorder %s22, 0
    %p63 = por %p61, %p62
    %s65 = sadd.s32 %s64, 1
    %p68 = scmp.eq.s32.totalorder %s16, 1
    %p69 = scmp.ne.s32.totalorder %s64, %s66
    %p70 = scmp.eq.s32.totalorder %s16, 0
    %p71 = por %p69, %p70
    %p72 = scmp.ne.s32.totalorder %s64, %s66
    %p73 = scmp.eq.s32.totalorder %s21, 1
    %p74 = por %p72, %p73
    %p75 = scmp.ne.s32.totalorder %s66, %s67
    %p76 = scmp.eq.s32.totalorder %s21, 0
    %p77 = por %p75, %p76
    %p78 = scmp.ne.s32.totalorder %s66, %s67
    %p79 = scmp.eq.s32.totalorder %s22, 1
    %p80 = por %p78, %p79
    %p82 = scmp.ne.s32.totalorder %s67, %s81
    %p83 = scmp.eq.s32.totalorder %s22, 0
    %p84 = por %p82, %p83
    %s86 = sadd.s32 %s85, 1
    %p89 = scmp.eq.s32.totalorder %s16, 1
    %p90 = scmp.ne.s32.totalorder %s85, %s87
    %p91 = scmp.eq.s32.totalorder %s16, 0
    %p92 = por %p90, %p91
    %p93 = scmp.ne.s32.totalorder %s85, %s87
    %p94 = scmp.eq.s32.totalorder %s21, 1
    %p95 = por %p93, %p94
    %p96 = scmp.ne.s32.totalorder %s87, %s88
    %p97 = scmp.eq.s32.totalorder %s21, 0
    %p98 = por %p96, %p97
    %p99 = scmp.ne.s32.totalorder %s87, %s88
    %p100 = scmp.eq.s32.totalorder %s22, 1
    %p101 = por %p99, %p100
    %p103 = scmp.ne.s32.totalorder %s88, %s102
    %p104 = scmp.eq.s32.totalorder %s22, 0
    %p105 = por %p103, %p104
    %s107 = sadd.s32 %s106, 1
    %p110 = scmp.eq.s32.totalorder %s16, 1
    %p111 = scmp.ne.s32.totalorder %s106, %s108
    %p112 = scmp.eq.s32.totalorder %s16, 0
    %p113 = por %p111, %p112
    %p114 = scmp.ne.s32.totalorder %s106, %s108
    %p115 = scmp.eq.s32.totalorder %s21, 1
    %p116 = por %p114, %p115
    %p117 = scmp.ne.s32.totalorder %s108, %s109
    %p118 = scmp.eq.s32.totalorder %s21, 0
    %p119 = por %p117, %p118
    %p120 = scmp.ne.s32.totalorder %s108, %s109
    %p121 = scmp.eq.s32.totalorder %s22, 1
    %p122 = por %p120, %p121
    %p124 = scmp.ne.s32.totalorder %s109, %s123
    %p125 = scmp.eq.s32.totalorder %s22, 0
    %p126 = por %p124, %p125
    %s128 = sadd.s32 %s127, 1
    %p131 = scmp.eq.s32.totalorder %s16, 1
    %p132 = scmp.ne.s32.totalorder %s127, %s129
    %p133 = scmp.eq.s32.totalorder %s16, 0
    %p134 = por %p132, %p133
    %p135 = scmp.ne.s32.totalorder %s127, %s129
    %p136 = scmp.eq.s32.totalorder %s21, 1
    %p137 = por %p135, %p136
    %p138 = scmp.ne.s32.totalorder %s129, %s130
    %p139 = scmp.eq.s32.totalorder %s21, 0
    %p140 = por %p138, %p139
    %p141 = scmp.ne.s32.totalorder %s129, %s130
    %p142 = scmp.eq.s32.totalorder %s22, 1
    %p143 = por %p141, %p142
    %p145 = scmp.ne.s32.totalorder %s130, %s144
    %p146 = scmp.eq.s32.totalorder %s22, 0
    %p147 = por %p145, %p146
    %s149 = sadd.s32 %s148, 1
    %p152 = scmp.eq.s32.totalorder %s16, 1
    %p153 = scmp.ne.s32.totalorder %s148, %s150
    %p154 = scmp.eq.s32.totalorder %s16, 0
    %p155 = por %p153, %p154
    %p156 = scmp.ne.s32.totalorder %s148, %s150
    %p157 = scmp.eq.s32.totalorder %s21, 1
    %p158 = por %p156, %p157
    %p159 = scmp.ne.s32.totalorder %s150, %s151
    %p160 = scmp.eq.s32.totalorder %s21, 0
    %p161 = por %p159, %p160
    %p162 = scmp.ne.s32.totalorder %s150, %s151
    %p163 = scmp.eq.s32.totalorder %s22, 1
    %p164 = por %p162, %p163
    %p166 = scmp.ne.s32.totalorder %s151, %s165
    %p167 = scmp.eq.s32.totalorder %s22, 0
    %p168 = por %p166, %p167
    %s170 = sadd.s32 %s169, 1
    %p173 = scmp.eq.s32.totalorder %s16, 1
    %p174 = scmp.ne.s32.totalorder %s169, %s171
    %p175 = scmp.eq.s32.totalorder %s16, 0
    %p176 = por %p174, %p175
    %p177 = scmp.ne.s32.totalorder %s169, %s171
    %p178 = scmp.eq.s32.totalorder %s21, 1
    %p179 = por %p177, %p178
    %p180 = scmp.ne.s32.totalorder %s171, %s172
    %p181 = scmp.eq.s32.totalorder %s21, 0
    %p182 = por %p180, %p181
    %p183 = scmp.ne.s32.totalorder %s171, %s172
    %p184 = scmp.eq.s32.totalorder %s22, 1
    %p185 = por %p183, %p184
    %p187 = scmp.ne.s32.totalorder %s172, %s186
    %p188 = scmp.eq.s32.totalorder %s22, 0
    %p189 = por %p187, %p188
    %s191 = sadd.s32 %s190, 1
    %p194 = scmp.eq.s32.totalorder %s16, 1
    %p195 = scmp.ne.s32.totalorder %s190, %s192
    %p196 = scmp.eq.s32.totalorder %s16, 0
    %p197 = por %p195, %p196
    %p198 = scmp.ne.s32.totalorder %s190, %s192
    %p199 = scmp.eq.s32.totalorder %s21, 1
    %p200 = por %p198, %p199
    %p201 = scmp.ne.s32.totalorder %s192, %s193
    %p202 = scmp.eq.s32.totalorder %s21, 0
    %p203 = por %p201, %p202
    %p204 = scmp.ne.s32.totalorder %s192, %s193
    %p205 = scmp.eq.s32.totalorder %s22, 1
    %p206 = por %p204, %p205
    %p208 = scmp.ne.s32.totalorder %s193, %s207
    %p209 = scmp.eq.s32.totalorder %s22, 0
    %p210 = por %p208, %p209
    %s212 = sadd.s32 %s211, 1
    %p215 = scmp.eq.s32.totalorder %s16, 1
    %p216 = scmp.ne.s32.totalorder %s211, %s213
    %p217 = scmp.eq.s32.totalorder %s16, 0
    %p218 = por %p216, %p217
    %p219 = scmp.ne.s32.totalorder %s211, %s213
    %p220 = scmp.eq.s32.totalorder %s21, 1
    %p221 = por %p219, %p220
    %p222 = scmp.ne.s32.totalorder %s213, %s214
    %p223 = scmp.eq.s32.totalorder %s21, 0
    %p224 = por %p222, %p223
    %p225 = scmp.ne.s32.totalorder %s213, %s214
    %p226 = scmp.eq.s32.totalorder %s22, 1
    %p227 = por %p225, %p226
    %p229 = scmp.ne.s32.totalorder %s214, %s228
    %p230 = scmp.eq.s32.totalorder %s22, 0
    %p231 = por %p229, %p230
    %s233 = sadd.s32 %s232, 1
    %p236 = scmp.eq.s32.totalorder %s16, 1
    %p237 = scmp.ne.s32.totalorder %s232, %s234
    %p238 = scmp.eq.s32.totalorder %s16, 0
    %p239 = por %p237, %p238
    %p240 = scmp.ne.s32.totalorder %s232, %s234
    %p241 = scmp.eq.s32.totalorder %s21, 1
    %p242 = por %p240, %p241
    %p243 = scmp.ne.s32.totalorder %s234, %s235
    %p244 = scmp.eq.s32.totalorder %s21, 0
    %p245 = por %p243, %p244
    %p246 = scmp.ne.s32.totalorder %s234, %s235
    %p247 = scmp.eq.s32.totalorder %s22, 1
    %p248 = por %p246, %p247
    %p250 = scmp.ne.s32.totalorder %s235, %s249
    %p251 = scmp.eq.s32.totalorder %s22, 0
    %p252 = por %p250, %p251
    %s253 = ssub.s32 %s23, %s35
    %p254 = scmp.eq.s32.totalorder %s253, 0
    %s256 = sadd.s32 %s255, 1
    %s257 = scalar_select %p254, %s255, %s256
    %p260 = pneg %p254
    %p261 = scmp.eq.s32.totalorder %s16, 1
    %p262 = por %p260, %p261
    %p263 = scmp.ne.s32.totalorder %s255, %s258
    %p264 = scmp.eq.s32.totalorder %s16, 0
    %p265 = por %p263, %p264
    %p266 = scmp.ne.s32.totalorder %s255, %s258
    %p267 = scmp.eq.s32.totalorder %s21, 1
    %p268 = por %p266, %p267
    %p269 = scmp.ne.s32.totalorder %s258, %s259
    %p270 = scmp.eq.s32.totalorder %s21, 0
    %p271 = por %p269, %p270
    %p272 = scmp.ne.s32.totalorder %s258, %s259
    %p273 = scmp.eq.s32.totalorder %s22, 1
    %p274 = por %p272, %p273
    %p276 = scmp.ne.s32.totalorder %s259, %s275
    %p277 = scmp.eq.s32.totalorder %s22, 0
    %p278 = por %p276, %p277
    %p279 = scmp.le.s32.totalorder 1, %s16
    %p280 = scmp.lt.s32.totalorder %s16, 3
    %p281 = pnand %p279, %p280
    %p282 = pneg %p281
    // Predicated region
    $region9: #{timm_forward.1} parent=5 // pred_check
      _
    $region10: #{timm_forward.1} parent=5 // pred_check_branch
      %284 = sbr.rel (%p281) target = $region12
    $region11: #{timm_forward.1} parent=5 // pred_region
      %s285 = ssub.s32 %s16, 1
      // Predicated region
      $region13: #{timm_forward.1} parent=11 // pred_check
        %p286 = pneg %p77
      $region14: #{timm_forward.1} parent=11 // pred_check_branch
        %288 = sbr.rel (%p286) target = $region16
      $region15: #{timm_forward.1} parent=11 // pred_region
        _
      $region16: #{timm_forward.1} parent=11 // pred_fallthru
        _
      // Predicated region
      $region17: #{timm_forward.1} parent=11 // pred_check
        %p289 = pneg %p98
      $region18: #{timm_forward.1} parent=11 // pred_check_branch
        %291 = sbr.rel (%p289) target = $region20
      $region19: #{timm_forward.1} parent=11 // pred_region
        _
      $region20: #{timm_forward.1} parent=11 // pred_fallthru
        _
      // Predicated region
      $region21: #{timm_forward.1} parent=11 // pred_check
        %p292 = pneg %p119
      $region22: #{timm_forward.1} parent=11 // pred_check_branch
        %294 = sbr.rel (%p292) target = $region24
      $region23: #{timm_forward.1} parent=11 // pred_region
        _
      $region24: #{timm_forward.1} parent=11 // pred_fallthru
        _
      // Predicated region
      $region25: #{timm_forward.1} parent=11 // pred_check
        %p295 = pneg %p140
      $region26: #{timm_forward.1} parent=11 // pred_check_branch
        %297 = sbr.rel (%p295) target = $region28
      $region27: #{timm_forward.1} parent=11 // pred_region
        _
      $region28: #{timm_forward.1} parent=11 // pred_fallthru
        _
      // Predicated region
      $region29: #{timm_forward.1} parent=11 // pred_check
        %p298 = pneg %p161
      $region30: #{timm_forward.1} parent=11 // pred_check_branch
        %300 = sbr.rel (%p298) target = $region32
      $region31: #{timm_forward.1} parent=11 // pred_region
        _
      $region32: #{timm_forward.1} parent=11 // pred_fallthru
        _
      // Predicated region
      $region33: #{timm_forward.1} parent=11 // pred_check
        %p301 = pneg %p182
      $region34: #{timm_forward.1} parent=11 // pred_check_branch
        %303 = sbr.rel (%p301) target = $region36
      $region35: #{timm_forward.1} parent=11 // pred_region
        _
      $region36: #{timm_forward.1} parent=11 // pred_fallthru
        _
      // Predicated region
      $region37: #{timm_forward.1} parent=11 // pred_check
        %p304 = pneg %p203
      $region38: #{timm_forward.1} parent=11 // pred_check_branch
        %306 = sbr.rel (%p304) target = $region40
      $region39: #{timm_forward.1} parent=11 // pred_region
        _
      $region40: #{timm_forward.1} parent=11 // pred_fallthru
        _
      // Predicated region
      $region41: #{timm_forward.1} parent=11 // pred_check
        %p307 = pneg %p224
      $region42: #{timm_forward.1} parent=11 // pred_check_branch
        %309 = sbr.rel (%p307) target = $region44
      $region43: #{timm_forward.1} parent=11 // pred_region
        _
      $region44: #{timm_forward.1} parent=11 // pred_fallthru
        _
      // Predicated region
      $region45: #{timm_forward.1} parent=11 // pred_check
        %p310 = pneg %p245
      $region46: #{timm_forward.1} parent=11 // pred_check_branch
        %312 = sbr.rel (%p310) target = $region48
      $region47: #{timm_forward.1} parent=11 // pred_region
        _
      $region48: #{timm_forward.1} parent=11 // pred_fallthru
        _
    $region12: #{timm_forward.1} parent=5 // pred_fallthru
      _
    %p313 = scmp.lt.s32.totalorder %s16, 2
    // Predicated region
    $region49: #{timm_forward.1} parent=5 // pred_check
      %p314 = pneg %p313
    $region50: #{timm_forward.1} parent=5 // pred_check_branch
      %316 = sbr.rel (%p314) target = $region52
    $region51: #{timm_forward.1} parent=5 // pred_region
      // Predicated region
      $region53: #{timm_forward.1} parent=51 // pred_check
        %p317 = pneg %p50
      $region54: #{timm_forward.1} parent=51 // pred_check_branch
        %319 = sbr.rel (%p317) target = $region56
      $region55: #{timm_forward.1} parent=51 // pred_region
        %s320 = smul.u32 32, %s24
        %p321 = scmp.lt.s32.totalorder %s23, 1
        %s322 = scalar_select %p321, %s23, 1
        %p323 = scmp.lt.s32.totalorder %s320, 31
        %s324 = scalar_select %p323, %s320, 31
        %s325 = smul.addr %s322, 32
        %s326 = sadd.s32 %s324, %s325
        %s327 = smul.addr %s326, 4
        %s328 = scalar_lea.vmem %s0, %s327
        %s329 = smul.u32 32, %s24
      $region56: #{timm_forward.1} parent=51 // pred_fallthru
        _
    $region52: #{timm_forward.1} parent=5 // pred_fallthru
      _
    %p330 = scmp.le.s32.totalorder 1, %s16
    %p331 = scmp.lt.s32.totalorder %s16, 3
    %p332 = pnand %p330, %p331
    %p333 = pneg %p332
    // Predicated region
    $region57: #{timm_forward.1} parent=5 // pred_check
      _
    $region58: #{timm_forward.1} parent=5 // pred_check_branch
      %335 = sbr.rel (%p332) target = $region60
    $region59: #{timm_forward.1} parent=5 // pred_region
      %s336 = ssub.s32 %s16, 1
      %s337 = smul.u32 32, %s26
      %p338 = scmp.lt.s32.totalorder %s25, 1
      %s339 = scalar_select %p338, %s25, 1
      %p340 = scmp.lt.s32.totalorder %s337, 31
      %s341 = scalar_select %p340, %s337, 31
      %s342 = smul.addr %s339, 32
      %s343 = sadd.s32 %s341, %s342
      %s344 = smul.addr %s343, 4
      %s345 = scalar_lea.vmem %s0, %s344
      %p346 = pneg %p56
      %p347 = pneg %p53
      %p348 = pneg %p77
      %p349 = pneg %p74
      %p350 = pneg %p98
      %p351 = pneg %p95
      %p352 = pneg %p119
      %p353 = pneg %p116
      %p354 = pneg %p140
      %p355 = pneg %p137
      %p356 = pneg %p161
      %p357 = pneg %p158
      %p358 = pneg %p182
      %p359 = pneg %p179
      %p360 = pneg %p203
      %p361 = pneg %p200
      %p362 = pneg %p224
      %p363 = pneg %p221
      %p364 = pneg %p245
      %p365 = pneg %p242
      %p366 = pneg %p271
      %p367 = pneg %p268
      %p368 = scmp.lt.s32.totalorder %s25, 1
      %s369 = scalar_select %p368, %s25, 1
      %s370 = scalar_lea.vmem %s10, %s369
      %s371 = smul.u32 32, %s26
      %p372 = scmp.lt.s32.totalorder %s25, 1
      %s373 = scalar_select %p372, %s25, 1
      %p374 = scmp.lt.s32.totalorder %s371, 31
      %s375 = scalar_select %p374, %s371, 31
      %s376 = smul.addr %s373, 32
      %s377 = sadd.s32 %s375, %s376
      %s378 = smul.addr %s377, 4
      %s379 = scalar_lea.vmem %s0, %s378
      %s380 = smul.u32 32, %s26
      %p381 = scmp.lt.s32.totalorder %s25, 1
      %s382 = scalar_select %p381, %s25, 1
      %s383 = scalar_lea.vmem %s10, %s382
      %v385 = vld [vmem:[%s379] sm:$0xf]
      %v386 = vld [vmem:[%s379 + $0x4] sm:$0xf]
      %v387 = vld [vmem:[%s379 + $0x8] sm:$0xf]
      %v388 = vld [vmem:[%s379 + $0xc] sm:$0xf]
      %v389 = vld [vmem:[%s379 + $0x10] sm:$0xf]
      %v390 = vld [vmem:[%s379 + $0x14] sm:$0xf]
      %v391 = vld [vmem:[%s379 + $0x18] sm:$0xf]
      %v392 = vld [vmem:[%s379 + $0x1c] sm:$0xf]
      %v393 = vld [vmem:[%s379 + $0x20] sm:$0xf]
      %v394 = vld [vmem:[%s379 + $0x24] sm:$0xf]
      %v395 = vld [vmem:[%s379 + $0x28] sm:$0xf]
      %v396 = vld [vmem:[%s379 + $0x2c] sm:$0xf]
      %v397 = vld [vmem:[%s379 + $0x30] sm:$0xf]
      %v398 = vld [vmem:[%s379 + $0x34] sm:$0xf]
      %v399 = vld [vmem:[%s379 + $0x38] sm:$0xf]
      %v400 = vld [vmem:[%s379 + $0x3c] sm:$0xf]
      %v401 = vld [vmem:[%s379 + $0x40] sm:$0xf]
      %v402 = vld [vmem:[%s379 + $0x44] sm:$0xf]
      %v403 = vld [vmem:[%s379 + $0x48] sm:$0xf]
      %v404 = vld [vmem:[%s379 + $0x4c] sm:$0xf]
      %v405 = vld [vmem:[%s379 + $0x50] sm:$0xf]
      %v406 = vld [vmem:[%s379 + $0x54] sm:$0xf]
      %v407 = vld [vmem:[%s379 + $0x58] sm:$0xf]
      %v408 = vld [vmem:[%s379 + $0x5c] sm:$0xf]
      %v409 = vld [vmem:[%s379 + $0x60] sm:$0xf]
      %v410 = vld [vmem:[%s379 + $0x64] sm:$0xf]
      %v411 = vld [vmem:[%s379 + $0x68] sm:$0xf]
      %v412 = vld [vmem:[%s379 + $0x6c] sm:$0xf]
      %v413 = vld [vmem:[%s379 + $0x70] sm:$0xf]
      %v414 = vld [vmem:[%s379 + $0x74] sm:$0xf]
      %v415 = vld [vmem:[%s379 + $0x78] sm:$0xf]
      %v416 = vld [vmem:[%s379 + $0x7c] sm:$0xf]
      %v417 = vld [vmem:[%s1] sm:$0xf]
      %v418 = vld [vmem:[%s1 + $0x4] sm:$0xf]
      %v419 = vld [vmem:[%s1 + $0x8] sm:$0xf]
      %v420 = vld [vmem:[%s1 + $0xc] sm:$0xf]
      %v453 = vunpack.c.l.b16 %v385
      %v454 = vunpack.c.l.b16 %v386
      %v455 = vunpack.c.l.b16 %v387
      %v456 = vunpack.c.l.b16 %v388
      %v457 = vunpack.c.l.b16 %v389
      %v458 = vunpack.c.l.b16 %v390
      %v459 = vunpack.c.l.b16 %v391
      %v460 = vunpack.c.l.b16 %v392
      %v461 = vunpack.c.l.b16 %v393
      %v462 = vunpack.c.l.b16 %v394
      %v463 = vunpack.c.l.b16 %v395
      %v464 = vunpack.c.l.b16 %v396
      %v465 = vunpack.c.l.b16 %v397
      %v466 = vunpack.c.l.b16 %v398
      %v467 = vunpack.c.l.b16 %v399
      %v468 = vunpack.c.l.b16 %v400
      %v469 = vunpack.c.l.b16 %v401
      %v470 = vunpack.c.l.b16 %v402
      %v471 = vunpack.c.l.b16 %v403
      %v472 = vunpack.c.l.b16 %v404
      %v473 = vunpack.c.l.b16 %v405
      %v474 = vunpack.c.l.b16 %v406
      %v475 = vunpack.c.l.b16 %v407
      %v476 = vunpack.c.l.b16 %v408
      %v477 = vunpack.c.l.b16 %v409
      %v478 = vunpack.c.l.b16 %v410
      %v479 = vunpack.c.l.b16 %v411
      %v480 = vunpack.c.l.b16 %v412
      %v481 = vunpack.c.l.b16 %v413
      %v482 = vunpack.c.l.b16 %v414
      %v483 = vunpack.c.l.b16 %v415
      %v484 = vunpack.c.l.b16 %v416
      %v485 = vpack.c.b16 %v454, %v453
      %v486 = vpack.c.b16 %v456, %v455
      %v487 = vpack.c.b16 %v458, %v457
      %v488 = vpack.c.b16 %v460, %v459
      %v489 = vpack.c.b16 %v462, %v461
      %v490 = vpack.c.b16 %v464, %v463
      %v491 = vpack.c.b16 %v466, %v465
      %v492 = vpack.c.b16 %v468, %v467
      %v493 = vpack.c.b16 %v470, %v469
      %v494 = vpack.c.b16 %v472, %v471
      %v495 = vpack.c.b16 %v474, %v473
      %v496 = vpack.c.b16 %v476, %v475
      %v497 = vpack.c.b16 %v478, %v477
      %v498 = vpack.c.b16 %v480, %v479
      %v499 = vpack.c.b16 %v482, %v481
      %v500 = vpack.c.b16 %v484, %v483
      %v505 = vunpack.c.l.b16 %v417
      %v506 = vunpack.c.l.b16 %v418
      %v507 = vunpack.c.l.b16 %v419
      %v508 = vunpack.c.l.b16 %v420
      %v509 = vpack.c.b16 %v506, %v505
      %v510 = vpack.c.b16 %v508, %v507
      %vm513 = vcmask 261120
      %v515 = vsel %vm513, %v485, 0
      %v518 = vsel %vm513, %v486, 0
      %v521 = vsel %vm513, %v487, 0
      %v524 = vsel %vm513, %v488, 0
      %v527 = vsel %vm513, %v489, 0
      %v530 = vsel %vm513, %v490, 0
      %v533 = vsel %vm513, %v491, 0
      %v536 = vsel %vm513, %v492, 0
      %v539 = vsel %vm513, %v493, 0
      %v542 = vsel %vm513, %v494, 0
      %v545 = vsel %vm513, %v495, 0
      %v548 = vsel %vm513, %v496, 0
      %v551 = vsel %vm513, %v497, 0
      %v554 = vsel %vm513, %v498, 0
      %v557 = vsel %vm513, %v499, 0
      %v560 = vsel %vm513, %v500, 0
      %562 = vmatprep.subr.bf16.mxu0 0
      %563 = vmatpush1.bf16.msra.mxu0 0
      %564 = vmatprep.subr.bf16.mxu0 0
      %565 = vmatpush1.bf16.msra.mxu0 0
      %566 = vmatprep.subr.bf16.mxu0 0
      %567 = vmatpush1.bf16.msra.mxu0 0
      %568 = vmatprep.subr.bf16.mxu0 0
      %569 = vmatpush1.bf16.msra.mxu0 0
      %570 = vmatprep.subr.bf16.mxu0 0
      %571 = vmatpush1.bf16.msra.mxu0 0
      %572 = vmatprep.subr.bf16.mxu0 0
      %573 = vmatpush1.bf16.msra.mxu0 0
      %574 = vmatprep.subr.bf16.mxu0 0
      %575 = vmatpush1.bf16.msra.mxu0 %v510
      %576 = vmatprep.subr.bf16.mxu0 0
      %577 = vmatpush1.bf16.msra.mxu0 %v509
      %578 = vmatprep.subr.bf16.mxu0 0
      %579 = vmatpush2.bf16.msra.mxu0 0
      %580 = vmatprep.subr.bf16.mxu0 0
      %581 = vmatpush2.bf16.msra.mxu0 0
      %582 = vmatprep.subr.bf16.mxu0 0
      %583 = vmatpush2.bf16.msra.mxu0 0
      %584 = vmatprep.subr.bf16.mxu0 0
      %585 = vmatpush2.bf16.msra.mxu0 0
      %586 = vmatprep.subr.bf16.mxu0 0
      %587 = vmatpush2.bf16.msra.mxu0 0
      %588 = vmatprep.subr.bf16.mxu0 0
      %589 = vmatpush2.bf16.msra.mxu0 0
      %590 = vmatprep.subr.bf16.mxu0 0
      %591 = vmatpush2.bf16.msra.mxu0 0
      %592 = vmatprep.subr.bf16.mxu0 0
      %593 = vmatpush2.bf16.msra.mxu0 0
      %594 = vmatprep.mubr.bf16.mxu0 0
      %595 = vmatmul.mubr.bf16.gmra.mxu0 %v515
      %v596 = vpop.f32.mrf.mxu0
      %v597 = vadd.f32 0.0, %v596
      %v598 = vpop.f32.mrf.mxu0
      %v599 = vpop.f32.mrf.mxu0
      %v600 = vadd.f32 0.0, %v599
      %v601 = vpop.f32.mrf.mxu0
      %602 = vmatprep.mubr.bf16.mxu0 0
      %603 = vmatmul.mubr.bf16.gmra.mxu0 %v518
      %v604 = vpop.f32.mrf.mxu0
      %v605 = vadd.f32 0.0, %v604
      %v606 = vpop.f32.mrf.mxu0
      %v607 = vpop.f32.mrf.mxu0
      %v608 = vadd.f32 0.0, %v607
      %v609 = vpop.f32.mrf.mxu0
      %610 = vmatprep.mubr.bf16.mxu0 0
      %611 = vmatmul.mubr.bf16.gmra.mxu0 %v521
      %v612 = vpop.f32.mrf.mxu0
      %v613 = vadd.f32 0.0, %v612
      %v614 = vpop.f32.mrf.mxu0
      %v615 = vpop.f32.mrf.mxu0
      %v616 = vadd.f32 0.0, %v615
      %v617 = vpop.f32.mrf.mxu0
      %618 = vmatprep.mubr.bf16.mxu0 0
      %619 = vmatmul.mubr.bf16.gmra.mxu0 %v524
      %v620 = vpop.f32.mrf.mxu0
      %v621 = vadd.f32 0.0, %v620
      %v622 = vpop.f32.mrf.mxu0
      %v623 = vpop.f32.mrf.mxu0
      %v624 = vadd.f32 0.0, %v623
      %v625 = vpop.f32.mrf.mxu0
      %626 = vmatprep.mubr.bf16.mxu0 0
      %627 = vmatmul.mubr.bf16.gmra.mxu0 %v527
      %v628 = vpop.f32.mrf.mxu0
      %v629 = vadd.f32 0.0, %v628
      %v630 = vpop.f32.mrf.mxu0
      %v631 = vpop.f32.mrf.mxu0
      %v632 = vadd.f32 0.0, %v631
      %v633 = vpop.f32.mrf.mxu0
      %634 = vmatprep.mubr.bf16.mxu0 0
      %635 = vmatmul.mubr.bf16.gmra.mxu0 %v530
      %v636 = vpop.f32.mrf.mxu0
      %v637 = vadd.f32 0.0, %v636
      %v638 = vpop.f32.mrf.mxu0
      %v639 = vpop.f32.mrf.mxu0
      %v640 = vadd.f32 0.0, %v639
      %v641 = vpop.f32.mrf.mxu0
      %642 = vmatprep.mubr.bf16.mxu0 0
      %643 = vmatmul.mubr.bf16.gmra.mxu0 %v533
      %v644 = vpop.f32.mrf.mxu0
      %v645 = vadd.f32 0.0, %v644
      %v646 = vpop.f32.mrf.mxu0
      %v647 = vpop.f32.mrf.mxu0
      %v648 = vadd.f32 0.0, %v647
      %v649 = vpop.f32.mrf.mxu0
      %650 = vmatprep.mubr.bf16.mxu0 0
      %651 = vmatmul.mubr.bf16.gmra.mxu0 %v536
      %v652 = vpop.f32.mrf.mxu0
      %v653 = vadd.f32 0.0, %v652
      %v654 = vpop.f32.mrf.mxu0
      %v655 = vpop.f32.mrf.mxu0
      %v656 = vadd.f32 0.0, %v655
      %v657 = vpop.f32.mrf.mxu0
      %658 = vmatprep.mubr.bf16.mxu0 0
      %659 = vmatmul.mubr.bf16.gmra.mxu0 %v539
      %v660 = vpop.f32.mrf.mxu0
      %v661 = vadd.f32 0.0, %v660
      %v662 = vpop.f32.mrf.mxu0
      %v663 = vpop.f32.mrf.mxu0
      %v664 = vadd.f32 0.0, %v663
      %v665 = vpop.f32.mrf.mxu0
      %666 = vmatprep.mubr.bf16.mxu0 0
      %667 = vmatmul.mubr.bf16.gmra.mxu0 %v542
      %v668 = vpop.f32.mrf.mxu0
      %v669 = vadd.f32 0.0, %v668
      %v670 = vpop.f32.mrf.mxu0
      %v671 = vpop.f32.mrf.mxu0
      %v672 = vadd.f32 0.0, %v671
      %v673 = vpop.f32.mrf.mxu0
      %674 = vmatprep.mubr.bf16.mxu0 0
      %675 = vmatmul.mubr.bf16.gmra.mxu0 %v545
      %v676 = vpop.f32.mrf.mxu0
      %v677 = vadd.f32 0.0, %v676
      %v678 = vpop.f32.mrf.mxu0
      %v679 = vpop.f32.mrf.mxu0
      %v680 = vadd.f32 0.0, %v679
      %v681 = vpop.f32.mrf.mxu0
      %682 = vmatprep.mubr.bf16.mxu0 0
      %683 = vmatmul.mubr.bf16.gmra.mxu0 %v548
      %v684 = vpop.f32.mrf.mxu0
      %v685 = vadd.f32 0.0, %v684
      %v686 = vpop.f32.mrf.mxu0
      %v687 = vpop.f32.mrf.mxu0
      %v688 = vadd.f32 0.0, %v687
      %v689 = vpop.f32.mrf.mxu0
      %690 = vmatprep.mubr.bf16.mxu0 0
      %691 = vmatmul.mubr.bf16.gmra.mxu0 %v551
      %v692 = vpop.f32.mrf.mxu0
      %v693 = vadd.f32 0.0, %v692
      %v694 = vpop.f32.mrf.mxu0
      %v695 = vpop.f32.mrf.mxu0
      %v696 = vadd.f32 0.0, %v695
      %v697 = vpop.f32.mrf.mxu0
      %698 = vmatprep.mubr.bf16.mxu0 0
      %699 = vmatmul.mubr.bf16.gmra.mxu0 %v554
      %v700 = vpop.f32.mrf.mxu0
      %v701 = vadd.f32 0.0, %v700
      %v702 = vpop.f32.mrf.mxu0
      %v703 = vpop.f32.mrf.mxu0
      %v704 = vadd.f32 0.0, %v703
      %v705 = vpop.f32.mrf.mxu0
      %706 = vmatprep.mubr.bf16.mxu0 0
      %707 = vmatmul.mubr.bf16.gmra.mxu0 %v557
      %v708 = vpop.f32.mrf.mxu0
      %v709 = vadd.f32 0.0, %v708
      %v710 = vpop.f32.mrf.mxu0
      %v711 = vpop.f32.mrf.mxu0
      %v712 = vadd.f32 0.0, %v711
      %v713 = vpop.f32.mrf.mxu0
      %714 = vmatprep.mubr.bf16.mxu0 0
      %715 = vmatmul.mubr.bf16.gmra.mxu0 %v560
      %v716 = vpop.f32.mrf.mxu0
      %v717 = vadd.f32 0.0, %v716
      %v718 = vpop.f32.mrf.mxu0
      %v719 = vpop.f32.mrf.mxu0
      %v720 = vadd.f32 0.0, %v719
      %v721 = vpop.f32.mrf.mxu0
      %722 = vdwg.mxu0
      %v723 = vld [vmem:[%s2] sm:$0x1]
      %v725 = vlaneseq
      %v726 = vshrl.u32 %v725, 7
      %v727 = vsub.s32 0, %v726
      %v728 = vrot.slane %v723, %v727
      %v730 = vmul.f32 %v597, %v728
      %v731 = vmul.f32 %v600, %v728
      %v732 = vmul.f32 %v605, %v728
      %v733 = vmul.f32 %v608, %v728
      %v734 = vmul.f32 %v613, %v728
      %v735 = vmul.f32 %v616, %v728
      %v736 = vmul.f32 %v621, %v728
      %v737 = vmul.f32 %v624, %v728
      %v738 = vmul.f32 %v629, %v728
      %v739 = vmul.f32 %v632, %v728
      %v740 = vmul.f32 %v637, %v728
      %v741 = vmul.f32 %v640, %v728
      %v742 = vmul.f32 %v645, %v728
      %v743 = vmul.f32 %v648, %v728
      %v744 = vmul.f32 %v653, %v728
      %v745 = vmul.f32 %v656, %v728
      %v746 = vmul.f32 %v661, %v728
      %v747 = vmul.f32 %v664, %v728
      %v748 = vmul.f32 %v669, %v728
      %v749 = vmul.f32 %v672, %v728
      %v750 = vmul.f32 %v677, %v728
      %v751 = vmul.f32 %v680, %v728
      %v752 = vmul.f32 %v685, %v728
      %v753 = vmul.f32 %v688, %v728
      %v754 = vmul.f32 %v693, %v728
      %v755 = vmul.f32 %v696, %v728
      %v756 = vmul.f32 %v701, %v728
      %v757 = vmul.f32 %v704, %v728
      %v758 = vmul.f32 %v709, %v728
      %v759 = vmul.f32 %v712, %v728
      %v760 = vmul.f32 %v717, %v728
      %v761 = vmul.f32 %v720, %v728
      %v762 = vld [vmem:[%s3] sm:$0x1]
      %v764 = vlaneseq
      %v765 = vshrl.u32 %v764, 7
      %v766 = vsub.s32 0, %v765
      %v767 = vrot.slane %v762, %v766
      %v769 = vadd.f32 %v730, %v767
      %v770 = vadd.f32 %v731, %v767
      %v771 = vadd.f32 %v732, %v767
      %v772 = vadd.f32 %v733, %v767
      %v773 = vadd.f32 %v734, %v767
      %v774 = vadd.f32 %v735, %v767
      %v775 = vadd.f32 %v736, %v767
      %v776 = vadd.f32 %v737, %v767
      %v777 = vadd.f32 %v738, %v767
      %v778 = vadd.f32 %v739, %v767
      %v779 = vadd.f32 %v740, %v767
      %v780 = vadd.f32 %v741, %v767
      %v781 = vadd.f32 %v742, %v767
      %v782 = vadd.f32 %v743, %v767
      %v783 = vadd.f32 %v744, %v767
      %v784 = vadd.f32 %v745, %v767
      %v785 = vadd.f32 %v746, %v767
      %v786 = vadd.f32 %v747, %v767
      %v787 = vadd.f32 %v748, %v767
      %v788 = vadd.f32 %v749, %v767
      %v789 = vadd.f32 %v750, %v767
      %v790 = vadd.f32 %v751, %v767
      %v791 = vadd.f32 %v752, %v767
      %v792 = vadd.f32 %v753, %v767
      %v793 = vadd.f32 %v754, %v767
      %v794 = vadd.f32 %v755, %v767
      %v795 = vadd.f32 %v756, %v767
      %v796 = vadd.f32 %v757, %v767
      %v797 = vadd.f32 %v758, %v767
      %v798 = vadd.f32 %v759, %v767
      %v799 = vadd.f32 %v760, %v767
      %v800 = vadd.f32 %v761, %v767
      %v801 = vmax.f32 %v769, 0.0
      %v802 = vmax.f32 %v770, 0.0
      %v803 = vmax.f32 %v771, 0.0
      %v804 = vmax.f32 %v772, 0.0
      %v805 = vmax.f32 %v773, 0.0
      %v806 = vmax.f32 %v774, 0.0
      %v807 = vmax.f32 %v775, 0.0
      %v808 = vmax.f32 %v776, 0.0
      %v809 = vmax.f32 %v777, 0.0
      %v810 = vmax.f32 %v778, 0.0
      %v811 = vmax.f32 %v779, 0.0
      %v812 = vmax.f32 %v780, 0.0
      %v813 = vmax.f32 %v781, 0.0
      %v814 = vmax.f32 %v782, 0.0
      %v815 = vmax.f32 %v783, 0.0
      %v816 = vmax.f32 %v784, 0.0
      %v817 = vmax.f32 %v785, 0.0
      %v818 = vmax.f32 %v786, 0.0
      %v819 = vmax.f32 %v787, 0.0
      %v820 = vmax.f32 %v788, 0.0
      %v821 = vmax.f32 %v789, 0.0
      %v822 = vmax.f32 %v790, 0.0
      %v823 = vmax.f32 %v791, 0.0
      %v824 = vmax.f32 %v792, 0.0
      %v825 = vmax.f32 %v793, 0.0
      %v826 = vmax.f32 %v794, 0.0
      %v827 = vmax.f32 %v795, 0.0
      %v828 = vmax.f32 %v796, 0.0
      %v829 = vmax.f32 %v797, 0.0
      %v830 = vmax.f32 %v798, 0.0
      %v831 = vmax.f32 %v799, 0.0
      %v832 = vmax.f32 %v800, 0.0
      %v833 = vsel %vm513, %v801, 0.0
      %v834 = vsel %vm513, %v802, 0.0
      %v835 = vadd.f32 %v833, %v834
      %v836 = vsel %vm513, %v803, 0.0
      %v837 = vadd.f32 %v835, %v836
      %v838 = vsel %vm513, %v804, 0.0
      %v839 = vadd.f32 %v837, %v838
      %v840 = vsel %vm513, %v805, 0.0
      %v841 = vadd.f32 %v839, %v840
      %v842 = vsel %vm513, %v806, 0.0
      %v843 = vadd.f32 %v841, %v842
      %v844 = vsel %vm513, %v807, 0.0
      %v845 = vadd.f32 %v843, %v844
      %v846 = vsel %vm513, %v808, 0.0
      %v847 = vadd.f32 %v845, %v846
      %v848 = vsel %vm513, %v809, 0.0
      %v849 = vadd.f32 %v847, %v848
      %v850 = vsel %vm513, %v810, 0.0
      %v851 = vadd.f32 %v849, %v850
      %v852 = vsel %vm513, %v811, 0.0
      %v853 = vadd.f32 %v851, %v852
      %v854 = vsel %vm513, %v812, 0.0
      %v855 = vadd.f32 %v853, %v854
      %v856 = vsel %vm513, %v813, 0.0
      %v857 = vadd.f32 %v855, %v856
      %v858 = vsel %vm513, %v814, 0.0
      %v859 = vadd.f32 %v857, %v858
      %v860 = vsel %vm513, %v815, 0.0
      %v861 = vadd.f32 %v859, %v860
      %v862 = vsel %vm513, %v816, 0.0
      %v863 = vadd.f32 %v861, %v862
      %v864 = vsel %vm513, %v817, 0.0
      %v865 = vadd.f32 %v863, %v864
      %v866 = vsel %vm513, %v818, 0.0
      %v867 = vadd.f32 %v865, %v866
      %v868 = vsel %vm513, %v819, 0.0
      %v869 = vadd.f32 %v867, %v868
      %v870 = vsel %vm513, %v820, 0.0
      %v871 = vadd.f32 %v869, %v870
      %v872 = vsel %vm513, %v821, 0.0
      %v873 = vadd.f32 %v871, %v872
      %v874 = vsel %vm513, %v822, 0.0
      %v875 = vadd.f32 %v873, %v874
      %v876 = vsel %vm513, %v823, 0.0
      %v877 = vadd.f32 %v875, %v876
      %v878 = vsel %vm513, %v824, 0.0
      %v879 = vadd.f32 %v877, %v878
      %v880 = vsel %vm513, %v825, 0.0
      %v881 = vadd.f32 %v879, %v880
      %v882 = vsel %vm513, %v826, 0.0
      %v883 = vadd.f32 %v881, %v882
      %v884 = vsel %vm513, %v827, 0.0
      %v885 = vadd.f32 %v883, %v884
      %v886 = vsel %vm513, %v828, 0.0
      %v887 = vadd.f32 %v885, %v886
      %v888 = vsel %vm513, %v829, 0.0
      %v889 = vadd.f32 %v887, %v888
      %v890 = vsel %vm513, %v830, 0.0
      %v891 = vadd.f32 %v889, %v890
      %v892 = vsel %vm513, %v831, 0.0
      %v893 = vadd.f32 %v891, %v892
      %v894 = vsel %vm513, %v832, 0.0
      %v895 = vadd.f32 %v893, %v894
      %v896 = vrot.slane %v895, 4
      %v897 = vadd.f32 %v895, %v896
      %v898 = vrot.slane %v897, 2
      %v899 = vadd.f32 %v897, %v898
      %v900 = vrot.slane %v899, 1
      %v901 = vadd.f32 %v899, %v900
      %v902 = vmul.f32 %v901, 0.00390625
      %v903 = vld [vmem:[%s4] sm:$0xff]
      %v904 = vld [vmem:[%s4 + $0x8] sm:$0xff]
      %v905 = vld [vmem:[%s4 + $0x10] sm:$0xff]
      %v906 = vld [vmem:[%s4 + $0x18] sm:$0xff]
      %v907 = vld [vmem:[%s5] sm:$0x1]
      %v909 = vsel %vm513, %v902, 0
      %911 = vmatprep.subr.mxu0 0.0
      %912 = vmatpush1.msra.mxu0 0.0
      %913 = vmatprep.subr.mxu0 0.0
      %914 = vmatpush1.msra.mxu0 0.0
      %915 = vmatprep.subr.mxu0 0.0
      %916 = vmatpush1.msra.mxu0 0.0
      %917 = vmatprep.subr.mxu0 0.0
      %918 = vmatpush1.msra.mxu0 0.0
      %919 = vmatprep.subr.mxu0 0.0
      %920 = vmatpush1.msra.mxu0 0.0
      %921 = vmatprep.subr.mxu0 0.0
      %922 = vmatpush1.msra.mxu0 0.0
      %923 = vmatprep.subr.mxu0 0.0
      %924 = vmatpush1.msra.mxu0 0.0
      %925 = vmatprep.subr.mxu0 0.0
      %926 = vmatpush1.msra.mxu0 0.0
      %927 = vmatprep.subr.mxu0 0.0
      %928 = vmatpush1.msra.mxu0 0.0
      %929 = vmatprep.subr.mxu0 0.0
      %930 = vmatpush1.msra.mxu0 0.0
      %931 = vmatprep.subr.mxu0 0.0
      %932 = vmatpush1.msra.mxu0 0.0
      %933 = vmatprep.subr.mxu0 0.0
      %934 = vmatpush1.msra.mxu0 0.0
      %935 = vmatprep.subr.mxu0 0.0
      %936 = vmatpush1.msra.mxu0 %v906
      %937 = vmatprep.subr.mxu0 0.0
      %938 = vmatpush1.msra.mxu0 %v905
      %939 = vmatprep.subr.mxu0 0.0
      %940 = vmatpush1.msra.mxu0 %v904
      %941 = vmatprep.subr.mxu0 0.0
      %942 = vmatpush1.msra.mxu0 %v903
      %943 = vmatprep.subr.mxu0 0.0
      %944 = vmatpush2.msra.mxu0 0.0
      %945 = vmatprep.subr.mxu0 0.0
      %946 = vmatpush2.msra.mxu0 0.0
      %947 = vmatprep.subr.mxu0 0.0
      %948 = vmatpush2.msra.mxu0 0.0
      %949 = vmatprep.subr.mxu0 0.0
      %950 = vmatpush2.msra.mxu0 0.0
      %951 = vmatprep.subr.mxu0 0.0
      %952 = vmatpush2.msra.mxu0 0.0
      %953 = vmatprep.subr.mxu0 0.0
      %954 = vmatpush2.msra.mxu0 0.0
      %955 = vmatprep.subr.mxu0 0.0
      %956 = vmatpush2.msra.mxu0 0.0
      %957 = vmatprep.subr.mxu0 0.0
      %958 = vmatpush2.msra.mxu0 0.0
      %959 = vmatprep.subr.mxu0 0.0
      %960 = vmatpush2.msra.mxu0 0.0
      %961 = vmatprep.subr.mxu0 0.0
      %962 = vmatpush2.msra.mxu0 0.0
      %963 = vmatprep.subr.mxu0 0.0
      %964 = vmatpush2.msra.mxu0 0.0
      %965 = vmatprep.subr.mxu0 0.0
      %966 = vmatpush2.msra.mxu0 0.0
      %967 = vmatprep.subr.mxu0 0.0
      %968 = vmatpush2.msra.mxu0 0.0
      %969 = vmatprep.subr.mxu0 0.0
      %970 = vmatpush2.msra.mxu0 0.0
      %971 = vmatprep.subr.mxu0 0.0
      %972 = vmatpush2.msra.mxu0 0.0
      %973 = vmatprep.subr.mxu0 0.0
      %974 = vmatpush2.msra.mxu0 0.0
      %975 = vmatprep.mubr.f32.mxu0 0.0
      %976 = vmatmul.mubr.f32.gmra.mxu0 %v909
      %v977 = vpop.f32.mrf.mxu0
      %v978 = vadd.f32 %v907, %v977
      %v979 = vpop.f32.mrf.mxu0
      %980 = vdwg.mxu0
      %v981 = vld [vmem:[%s6] sm:$0x1]
      %v982 = vmul.f32 %v978, %v981
      %v983 = vld [vmem:[%s7] sm:$0x1]
      %v984 = vadd.f32 %v982, %v983
      %v985 = vmax.f32 %v984, 0.0
      %v986 = vld [vmem:[%s8] sm:$0xff]
      %v987 = vld [vmem:[%s8 + $0x8] sm:$0xff]
      %v988 = vld [vmem:[%s9] sm:$0x1]
      %vm989 = vcmask 130048
      %v991 = vsel %vm989, %v985, 0
      %993 = vmatprep.subr.mxu0 0.0
      %994 = vmatpush1.msra.mxu0 0.0
      %995 = vmatprep.subr.mxu0 0.0
      %996 = vmatpush1.msra.mxu0 0.0
      %997 = vmatprep.subr.mxu0 0.0
      %998 = vmatpush1.msra.mxu0 0.0
      %999 = vmatprep.subr.mxu0 0.0
      %1000 = vmatpush1.msra.mxu0 0.0
      %1001 = vmatprep.subr.mxu0 0.0
      %1002 = vmatpush1.msra.mxu0 0.0
      %1003 = vmatprep.subr.mxu0 0.0
      %1004 = vmatpush1.msra.mxu0 0.0
      %1005 = vmatprep.subr.mxu0 0.0
      %1006 = vmatpush1.msra.mxu0 0.0
      %1007 = vmatprep.subr.mxu0 0.0
      %1008 = vmatpush1.msra.mxu0 0.0
      %1009 = vmatprep.subr.mxu0 0.0
      %1010 = vmatpush1.msra.mxu0 0.0
      %1011 = vmatprep.subr.mxu0 0.0
      %1012 = vmatpush1.msra.mxu0 0.0
      %1013 = vmatprep.subr.mxu0 0.0
      %1014 = vmatpush1.msra.mxu0 0.0
      %1015 = vmatprep.subr.mxu0 0.0
      %1016 = vmatpush1.msra.mxu0 0.0
      %1017 = vmatprep.subr.mxu0 0.0
      %1018 = vmatpush1.msra.mxu0 0.0
      %1019 = vmatprep.subr.mxu0 0.0
      %1020 = vmatpush1.msra.mxu0 0.0
      %1021 = vmatprep.subr.mxu0 0.0
      %1022 = vmatpush1.msra.mxu0 %v987
      %1023 = vmatprep.subr.mxu0 0.0
      %1024 = vmatpush1.msra.mxu0 %v986
      %1025 = vmatprep.subr.mxu0 0.0
      %1026 = vmatpush2.msra.mxu0 0.0
      %1027 = vmatprep.subr.mxu0 0.0
      %1028 = vmatpush2.msra.mxu0 0.0
      %1029 = vmatprep.subr.mxu0 0.0
      %1030 = vmatpush2.msra.mxu0 0.0
      %1031 = vmatprep.subr.mxu0 0.0
      %1032 = vmatpush2.msra.mxu0 0.0
      %1033 = vmatprep.subr.mxu0 0.0
      %1034 = vmatpush2.msra.mxu0 0.0
      %1035 = vmatprep.subr.mxu0 0.0
      %1036 = vmatpush2.msra.mxu0 0.0
      %1037 = vmatprep.subr.mxu0 0.0
      %1038 = vmatpush2.msra.mxu0 0.0
      %1039 = vmatprep.subr.mxu0 0.0
      %1040 = vmatpush2.msra.mxu0 0.0
      %1041 = vmatprep.subr.mxu0 0.0
      %1042 = vmatpush2.msra.mxu0 0.0
      %1043 = vmatprep.subr.mxu0 0.0
      %1044 = vmatpush2.msra.mxu0 0.0
      %1045 = vmatprep.subr.mxu0 0.0
      %1046 = vmatpush2.msra.mxu0 0.0
      %1047 = vmatprep.subr.mxu0 0.0
      %1048 = vmatpush2.msra.mxu0 0.0
      %1049 = vmatprep.subr.mxu0 0.0
      %1050 = vmatpush2.msra.mxu0 0.0
      %1051 = vmatprep.subr.mxu0 0.0
      %1052 = vmatpush2.msra.mxu0 0.0
      %1053 = vmatprep.subr.mxu0 0.0
      %1054 = vmatpush2.msra.mxu0 0.0
      %1055 = vmatprep.subr.mxu0 0.0
      %1056 = vmatpush2.msra.mxu0 0.0
      %1057 = vmatprep.mubr.f32.mxu0 0.0
      %1058 = vmatmul.mubr.f32.gmra.mxu0 %v991
      %v1059 = vpop.f32.mrf.mxu0
      %v1060 = vadd.f32 %v988, %v1059
      %v1061 = vpop.f32.mrf.mxu0
      %1062 = vdwg.mxu0
      %1063 = vst [vmem:[%s383] sm:$0x1] %v1060
      %p1064 = scmp.lt.s32.totalorder %s25, 1
      %s1065 = scalar_select %p1064, %s25, 1
      %s1066 = scalar_lea.vmem %s10, %s1065
      // Predicated region
      $region61: #{timm_forward.1} parent=59 // pred_check
        %p1067 = pneg %p268
      $region62: #{timm_forward.1} parent=59 // pred_check_branch
        %1069 = sbr.rel (%p1067) target = $region64
      $region63: #{timm_forward.1} parent=59 // pred_region
        _
      $region64: #{timm_forward.1} parent=59 // pred_fallthru
        _
    $region60: #{timm_forward.1} parent=5 // pred_fallthru
      _
    %p1070 = scmp.le.s32.totalorder 2, %s16
    // Predicated region
    $region65: #{timm_forward.1} parent=5 // pred_check
      %p1071 = pneg %p1070
    $region66: #{timm_forward.1} parent=5 // pred_check_branch
      %1073 = sbr.rel (%p1071) target = $region68
    $region67: #{timm_forward.1} parent=5 // pred_region
      %s1074 = ssub.s32 %s16, 2
      // Predicated region
      $region69: #{timm_forward.1} parent=67 // pred_check
        %p1075 = pneg %p274
      $region70: #{timm_forward.1} parent=67 // pred_check_branch
        %1077 = sbr.rel (%p1075) target = $region72
      $region71: #{timm_forward.1} parent=67 // pred_region
        %p1078 = scmp.lt.s32.totalorder %s27, 1
        %s1079 = scalar_select %p1078, %s27, 1
        %s1080 = scalar_lea.vmem %s10, %s1079
      $region72: #{timm_forward.1} parent=67 // pred_fallthru
        _
    $region68: #{timm_forward.1} parent=5 // pred_fallthru
      _
  $region6: #{timm_forward.1} parent=0 // loop_footer
    %s20 = sadd.s32 1, %s16
  $region7: #{timm_forward.1} parent=0 // loop_footer_branch
    %15 = sbr.rel target = $region3
  $region8: #{timm_forward.1} parent=0 // loop_exit
    _

</llo_original>
